<compile_context>
chip_gen: v6e
topology: v6e:2x2x1
jax: 0.10.0
libtpu: 0.0.40
codegen_flags: <defaults>
</compile_context>

<pallas_src>
from functools import partial

import numpy as np
import jax
import jax.numpy as jnp
from jax.experimental import pallas as pl
from jax.experimental.pallas import tpu as pltpu

EXPANSION = 4


def _round_up(x, m):
    return (x + m - 1) // m * m


def _cdiv(a, b):
    return -(-a // b)


# ----------------------------------------------------------------------------
# Kernel 1: tiled bf16 matmul + affine (+ residual) (+ ReLU)
# ----------------------------------------------------------------------------
def _matmul_kernel(*refs, relu, res_mode):
    if res_mode is None:
        a_ref, w_ref, s_ref, h_ref, o_ref, acc_ref = refs
        r_ref = None
    else:
        a_ref, w_ref, s_ref, h_ref, r_ref, o_ref, acc_ref = refs
    k = pl.program_id(2)

    @pl.when(k == 0)
    def _():
        acc_ref[...] = jnp.zeros_like(acc_ref)

    acc_ref[...] += jnp.dot(a_ref[...], w_ref[...],
                            preferred_element_type=jnp.float32)

    @pl.when(k == pl.num_programs(2) - 1)
    def _():
        out = acc_ref[...] * s_ref[...] + h_ref[...]
        if res_mode == "pre_act":
            out = out + r_ref[...].astype(jnp.float32)
        if relu:
            out = jnp.maximum(out, 0.0)
        if res_mode == "post_act":
            out = out + r_ref[...].astype(jnp.float32)
        o_ref[...] = out.astype(o_ref.dtype)


@partial(jax.jit, static_argnames=("relu", "res_mode"))
def matmul_affine(a, w, scale, shift, residual=None, *, relu=False,
                  res_mode=None):
    """epilogue(a @ w) with a:(M,K), w:(K,N); bf16 MXU, f32 accumulation."""
    M, K = a.shape
    N = w.shape[1]

    tm = 256 if M >= 256 else _round_up(M, 8)
    tn = 512 if N >= 512 else (256 if N >= 256 else _round_up(N, 128))
    tk = K if K < 128 else (512 if K >= 512 else _round_up(K, 128))
    Mp, Np, Kp = _round_up(M, tm), _round_up(N, tn), _round_up(K, tk)

    a_p = jnp.pad(a.astype(jnp.bfloat16), ((0, Mp - M), (0, Kp - K)))
    w_p = jnp.pad(w.astype(jnp.bfloat16), ((0, Kp - K), (0, Np - N)))
    s_p = jnp.pad(scale.astype(jnp.float32), (0, Np - N)).reshape(1, Np)
    h_p = jnp.pad(shift.astype(jnp.float32), (0, Np - N)).reshape(1, Np)

    in_specs = [
        pl.BlockSpec((tm, tk), lambda i, j, k: (i, k)),
        pl.BlockSpec((tk, tn), lambda i, j, k: (k, j)),
        pl.BlockSpec((1, tn), lambda i, j, k: (0, j)),
        pl.BlockSpec((1, tn), lambda i, j, k: (0, j)),
    ]
    args = [a_p, w_p, s_p, h_p]
    if res_mode is not None:
        r_p = jnp.pad(residual.astype(jnp.bfloat16),
                      ((0, Mp - M), (0, Np - N)))
        in_specs.append(pl.BlockSpec((tm, tn), lambda i, j, k: (i, j)))
        args.append(r_p)

    out = pl.pallas_call(
        partial(_matmul_kernel, relu=relu, res_mode=res_mode),
        out_shape=jax.ShapeDtypeStruct((Mp, Np), jnp.bfloat16),
        grid=(Mp // tm, Np // tn, Kp // tk),
        in_specs=in_specs,
        out_specs=pl.BlockSpec((tm, tn), lambda i, j, k: (i, j)),
        scratch_shapes=[pltpu.VMEM((tm, tn), jnp.float32)],
        compiler_params=pltpu.CompilerParams(
            dimension_semantics=("parallel", "parallel", "arbitrary")),
        cost_estimate=pl.CostEstimate(
            flops=2 * Mp * Np * Kp, transcendentals=0,
            bytes_accessed=2 * (Mp * Kp + Kp * Np + 2 * Mp * Np)),
    )(*args)
    return out[:M, :N]


@partial(jax.jit, static_argnames=("stride", "relu", "res_mode"))
def conv1x1_affine(x, w, scale, shift, residual=None, *, stride=1, relu=False,
                   res_mode=None):
    if stride > 1:
        x = x[:, ::stride, ::stride, :]
    B, H, W, C = x.shape
    N = w.shape[1]
    res2 = None if residual is None else residual.reshape(B * H * W, N)
    out = matmul_affine(x.reshape(B * H * W, C), w, scale, shift, res2,
                        relu=relu, res_mode=res_mode)
    return out.reshape(B, H, W, N)


# ----------------------------------------------------------------------------
# Kernel 2: stride-1 3x3 (dilated) conv, taps accumulated in VMEM (no HBM
#           im2col).  Input comes as row-tiles (with halo) flattened to
#           (rows*Wp, C); tap (dy,dx) is a contiguous offset slice of it.
# ----------------------------------------------------------------------------
def _conv3x3_kernel(x_ref, w_ref, s_ref, h_ref, o_ref, *, th, Wp, dil, relu):
    L = th * Wp
    cout = o_ref.shape[-1]
    acc = jnp.zeros((L, cout), jnp.float32)
    for dy in range(3):
        for dx in range(3):
            start = dy * dil * Wp + dx * dil
            a = x_ref[0, pl.ds(start, L), :]
            acc = acc + jnp.dot(a, w_ref[dy * 3 + dx],
                                preferred_element_type=jnp.float32)
    out = acc * s_ref[...] + h_ref[...]
    if relu:
        out = jnp.maximum(out, 0.0)
    o_ref[0] = out.astype(o_ref.dtype)


@partial(jax.jit, static_argnames=("dil", "relu"))
def conv3x3_affine(x, w9, scale, shift, *, dil=1, relu=False):
    """3x3 conv, stride 1, padding = dilation, NHWC in / NHWC out."""
    B, H, W, C = x.shape
    cout = w9.shape[-1]
    th = min(8, H)
    n_t = _cdiv(H, th)
    Wp = W + 2 * dil
    Hp = H + 2 * dil
    win = th + 2 * dil + 1   # +1 row: keeps wrap-around tap reads inside block

    xpad = jnp.pad(x.astype(jnp.bfloat16),
                   ((0, 0), (dil, dil), (dil, dil), (0, 0)))
    idx = jnp.minimum(
        jnp.arange(n_t)[:, None] * th + jnp.arange(win)[None, :], Hp - 1
    ).reshape(-1)
    xh = jnp.take(xpad, idx, axis=1).reshape(B * n_t, win * Wp, C)

    out = pl.pallas_call(
        partial(_conv3x3_kernel, th=th, Wp=Wp, dil=dil, relu=relu),
        out_shape=jax.ShapeDtypeStruct((B * n_t, th * Wp, cout), jnp.bfloat16),
        grid=(B * n_t,),
        in_specs=[
            pl.BlockSpec((1, win * Wp, C), lambda i: (i, 0, 0)),
            pl.BlockSpec((9, C, cout), lambda i: (0, 0, 0)),
            pl.BlockSpec((1, cout), lambda i: (0, 0)),
            pl.BlockSpec((1, cout), lambda i: (0, 0)),
        ],
        out_specs=pl.BlockSpec((1, th * Wp, cout), lambda i: (i, 0, 0)),
        compiler_params=pltpu.CompilerParams(
            dimension_semantics=("parallel",)),
        cost_estimate=pl.CostEstimate(
            flops=2 * B * n_t * th * Wp * 9 * C * cout, transcendentals=0,
            bytes_accessed=2 * B * n_t * (win * Wp * C + th * Wp * cout)
            + 2 * 9 * C * cout),
    )(xh, w9.astype(jnp.bfloat16),
      scale.astype(jnp.float32).reshape(1, cout),
      shift.astype(jnp.float32).reshape(1, cout))

    return out.reshape(B, n_t * th, Wp, cout)[:, :H, :W, :]


# ----------------------------------------------------------------------------
# Strided 3x3 convs (stem, layer2.0 and layer3.0 only): im2col + tiled matmul
# ----------------------------------------------------------------------------
def _im2col(x, k, stride, padding, dilation=1):
    B, H, W, C = x.shape
    xp = jnp.pad(x, ((0, 0), (padding, padding), (padding, padding), (0, 0)))
    Hp, Wp = H + 2 * padding, W + 2 * padding
    ek = (k - 1) * dilation + 1
    Ho = (Hp - ek) // stride + 1
    Wo = (Wp - ek) // stride + 1
    taps = []
    for dy in range(k):
        for dx in range(k):
            y0, x0 = dy * dilation, dx * dilation
            taps.append(jax.lax.slice(
                xp, (0, y0, x0, 0),
                (B, y0 + (Ho - 1) * stride + 1, x0 + (Wo - 1) * stride + 1, C),
                (1, stride, stride, 1)))
    p = jnp.stack(taps, axis=3)      # (B, Ho, Wo, k*k, C)
    return p, Ho, Wo


@partial(jax.jit, static_argnames=("stride", "padding", "dilation", "relu"))
def conv3x3_strided_affine(x, w9, scale, shift, *, stride, padding,
                           dilation=1, relu=False):
    B, H, W, C = x.shape
    cout = w9.shape[-1]
    p, Ho, Wo = _im2col(x.astype(jnp.bfloat16), 3, stride, padding, dilation)
    a = p.reshape(B * Ho * Wo, 9 * C)
    out = matmul_affine(a, w9.reshape(9 * C, cout), scale, shift, relu=relu)
    return out.reshape(B, Ho, Wo, cout)


# ----------------------------------------------------------------------------
# Kernel 3: 3x3/s2 max-pool as a running max over a tap-major (9, M, C) stack
# ----------------------------------------------------------------------------
def _maxpool_kernel(x_ref, o_ref):
    t = pl.program_id(1)

    @pl.when(t == 0)
    def _():
        o_ref[...] = x_ref[0]

    @pl.when(t > 0)
    def _():
        o_ref[...] = jnp.maximum(o_ref[...], x_ref[0])


@jax.jit
def maxpool_3x3_s2(x):
    B, H, W, C = x.shape
    xp = jnp.pad(x, ((0, 0), (1, 1), (1, 1), (0, 0)),
                 constant_values=-jnp.inf)
    Ho = (H + 2 - 3) // 2 + 1
    Wo = (W + 2 - 3) // 2 + 1
    taps = []
    for dy in range(3):
        for dx in range(3):
            taps.append(jax.lax.slice(
                xp, (0, dy, dx, 0),
                (B, dy + 2 * (Ho - 1) + 1, dx + 2 * (Wo - 1) + 1, C),
                (1, 2, 2, 1)))
    stack = jnp.stack(taps, axis=0).reshape(9, B * Ho * Wo, C)
    M = B * Ho * Wo
    tm = 512 if M >= 512 else _round_up(M, 8)
    Mp = _round_up(M, tm)
    stack = jnp.pad(stack, ((0, 0), (0, Mp - M), (0, 0)))
    out = pl.pallas_call(
        _maxpool_kernel,
        out_shape=jax.ShapeDtypeStruct((Mp, C), x.dtype),
        grid=(Mp // tm, 9),
        in_specs=[pl.BlockSpec((1, tm, C), lambda m, t: (t, m, 0))],
        out_specs=pl.BlockSpec((tm, C), lambda m, t: (m, 0)),
        compiler_params=pltpu.CompilerParams(
            dimension_semantics=("parallel", "arbitrary")),
    )(stack)
    return out[:M].reshape(B, Ho, Wo, C)


# ----------------------------------------------------------------------------
# Kernel 4: fused 2x bilinear upsample (align_corners=False), C kept on lanes
# ----------------------------------------------------------------------------
def _upsample2x_kernel(x_ref, ee_ref, eo_ref, oe_ref, oo_ref, *, th, w):
    xa = x_ref[0, :, 0:w, :].astype(jnp.float32)       # col j-1 (edge clamped)
    xb = x_ref[0, :, 1:w + 1, :].astype(jnp.float32)   # col j
    xc = x_ref[0, :, 2:w + 2, :].astype(jnp.float32)   # col j+1 (edge clamped)
    ce = 0.25 * xa + 0.75 * xb                         # even output columns
    co = 0.75 * xb + 0.25 * xc                         # odd  output columns
    ee_ref[0] = (0.25 * ce[0:th] + 0.75 * ce[1:th + 1]).astype(ee_ref.dtype)
    eo_ref[0] = (0.25 * co[0:th] + 0.75 * co[1:th + 1]).astype(eo_ref.dtype)
    oe_ref[0] = (0.75 * ce[1:th + 1] + 0.25 * ce[2:th + 2]).astype(oe_ref.dtype)
    oo_ref[0] = (0.75 * co[1:th + 1] + 0.25 * co[2:th + 2]).astype(oo_ref.dtype)


@jax.jit
def bilinear_upsample_2x(x):
    B, h, w, C = x.shape
    xp = jnp.pad(x, ((0, 0), (1, 1), (1, 1), (0, 0)), mode="edge")
    th = min(8, h)
    n_t = _cdiv(h, th)
    win = th + 2
    idx = jnp.minimum(
        jnp.arange(n_t)[:, None] * th + jnp.arange(win)[None, :], h + 1
    ).reshape(-1)
    xh = jnp.take(xp, idx, axis=1).reshape(B * n_t, win, w + 2, C)
    piece = jax.ShapeDtypeStruct((B * n_t, th, w, C), jnp.bfloat16)
    ee, eo, oe, oo = pl.pallas_call(
        partial(_upsample2x_kernel, th=th, w=w),
        out_shape=(piece, piece, piece, piece),
        grid=(B * n_t,),
        in_specs=[pl.BlockSpec((1, win, w + 2, C), lambda i: (i, 0, 0, 0))],
        out_specs=tuple(pl.BlockSpec((1, th, w, C), lambda i: (i, 0, 0, 0))
                        for _ in range(4)),
        compiler_params=pltpu.CompilerParams(
            dimension_semantics=("parallel",)),
    )(xh)

    def asm(t):
        return t.reshape(B, n_t * th, w, C)[:, :h]

    ee, eo, oe, oo = (asm(t) for t in (ee, eo, oe, oo))
    even_rows = jnp.stack([ee, eo], axis=3)          # (B, h, w, 2, C)
    odd_rows = jnp.stack([oe, oo], axis=3)
    out = jnp.stack([even_rows, odd_rows], axis=2)   # (B, h, 2, w, 2, C)
    return out.reshape(B, 2 * h, 2 * w, C)


# ----------------------------------------------------------------------------
# Kernel 5: adaptive average pool (spatial mean)
# ----------------------------------------------------------------------------
def _mean_last_kernel(x_ref, o_ref):
    o_ref[...] = jnp.mean(x_ref[...].astype(jnp.float32), axis=-1,
                          keepdims=True)


@jax.jit
def mean_over_last(x):
    R, S = x.shape
    return pl.pallas_call(
        _mean_last_kernel,
        out_shape=jax.ShapeDtypeStruct((R, 1), jnp.float32),
        grid=(1,),
        in_specs=[pl.BlockSpec((R, S), lambda i: (0, 0))],
        out_specs=pl.BlockSpec((R, 1), lambda i: (0, 0)),
    )(x)


# ----------------------------------------------------------------------------
# Deterministic synthetic parameters
# ----------------------------------------------------------------------------
def he_conv1(key, cin, cout):
    w = jax.random.normal(key, (cin, cout), jnp.float32) * np.sqrt(2.0 / cin)
    return w.astype(jnp.bfloat16)


def he_conv3(key, cin, cout):
    w = jax.random.normal(key, (9, cin, cout), jnp.float32) * np.sqrt(
        2.0 / (9 * cin))
    return w.astype(jnp.bfloat16)


def bn_affine(key, c, gamma_scale=1.0):
    k1, k2, k3, k4 = jax.random.split(key, 4)
    gamma = jax.random.uniform(k1, (c,), jnp.float32, 0.5, 1.0) * gamma_scale
    beta = jax.random.normal(k2, (c,), jnp.float32) * 0.05
    mean = jax.random.normal(k3, (c,), jnp.float32) * 0.05
    var = jax.random.uniform(k4, (c,), jnp.float32, 0.8, 1.2)
    scale = gamma / jnp.sqrt(var + 1e-5)
    shift = beta - mean * scale
    return scale, shift


def init_bottleneck(key, cin, planes, stride, dilation, downsample):
    ks = jax.random.split(key, 8)
    p = {"stride": stride, "dilation": dilation}
    p["w1"] = he_conv1(ks[0], cin, planes)
    p["s1"], p["h1"] = bn_affine(ks[1], planes)
    p["w2"] = he_conv3(ks[2], planes, planes)
    p["s2"], p["h2"] = bn_affine(ks[3], planes)
    p["w3"] = he_conv1(ks[4], planes, planes * EXPANSION)
    p["s3"], p["h3"] = bn_affine(ks[5], planes * EXPANSION, gamma_scale=0.2)
    if downsample:
        p["wd"] = he_conv1(ks[6], cin, planes * EXPANSION)
        p["sd"], p["hd"] = bn_affine(ks[7], planes * EXPANSION)
    return p


def init_layer(key, inplanes, planes, blocks, stride, dil_first, dil_rest):
    keys = jax.random.split(key, blocks)
    out = []
    for i in range(blocks):
        cin = inplanes if i == 0 else planes * EXPANSION
        s = stride if i == 0 else 1
        dil = dil_first if i == 0 else dil_rest
        ds = (i == 0) and (stride != 1 or cin != planes * EXPANSION)
        out.append(init_bottleneck(keys[i], cin, planes, s, dil, ds))
    return out


def init_decoder(key, cin):
    k1, k2, k3 = jax.random.split(key, 3)
    w = he_conv1(k1, cin, 256)
    b = jax.random.normal(k2, (256,), jnp.float32) * 0.05
    scale, shift = bn_affine(k3, 256)
    return {"w": w, "scale": scale, "shift": shift + scale * b}  # fold bias


def init_edresnet(key):
    ks = jax.random.split(key, 12)
    P = {}
    P["stem_w"] = he_conv3(ks[0], 3, 64)
    P["stem_s"], P["stem_h"] = bn_affine(ks[1], 64)
    P["layer1"] = init_layer(ks[2], 64, 64, 3, 1, 1, 1)
    P["layer2"] = init_layer(ks[3], 256, 128, 4, 2, 1, 1)
    P["layer3"] = init_layer(ks[4], 512, 256, 23, 2, 1, 1)
    P["layer4"] = init_layer(ks[5], 1024, 512, 3, 1, 1, 2)
    P["decoder2"] = init_decoder(ks[6], 512)
    P["decoder3"] = init_decoder(ks[7], 1024)
    P["decoder4"] = init_decoder(ks[8], 2048)
    kc1, kc2 = jax.random.split(ks[9])
    P["conn_w"] = he_conv3(kc1, 256, 32)
    P["conn_b"] = jax.random.normal(kc2, (32,), jnp.float32) * 0.05
    kb1, kb2 = jax.random.split(ks[10])
    kf1, kf2 = jax.random.split(ks[11])
    wbg = jax.random.normal(kb1, (16, 1), jnp.float32) * np.sqrt(2.0 / 16)
    wfg = jax.random.normal(kf1, (16, 1), jnp.float32) * np.sqrt(2.0 / 16)
    zeros = jnp.zeros((16, 1), jnp.float32)
    # bg head acts on channels 0:16, fg head on 16:32 -> one packed (32, 2) W
    P["head_w"] = jnp.concatenate(
        [jnp.concatenate([wbg, zeros], axis=0),
         jnp.concatenate([zeros, wfg], axis=0)], axis=1).astype(jnp.bfloat16)
    P["head_b"] = jnp.concatenate(
        [jax.random.normal(kb2, (1,), jnp.float32) * 0.05,
         jax.random.normal(kf2, (1,), jnp.float32) * 0.05])
    return P


# ----------------------------------------------------------------------------
# Forward pass
# ----------------------------------------------------------------------------
def bottleneck_forward(x, p):
    if "wd" in p:
        idn = conv1x1_affine(x, p["wd"], p["sd"], p["hd"], stride=p["stride"])
    else:
        idn = x
    out = conv1x1_affine(x, p["w1"], p["s1"], p["h1"], relu=True)
    if p["stride"] == 1:
        out = conv3x3_affine(out, p["w2"], p["s2"], p["h2"],
                             dil=p["dilation"], relu=True)
    else:
        out = conv3x3_strided_affine(out, p["w2"], p["s2"], p["h2"],
                                     stride=p["stride"],
                                     padding=p["dilation"],
                                     dilation=p["dilation"], relu=True)
    # residual add + ReLU fused into the 1x1 expansion matmul epilogue
    out = conv1x1_affine(out, p["w3"], p["s3"], p["h3"], residual=idn,
                         relu=True, res_mode="pre_act")
    return out


def edresnet_forward(P, x_nchw):
    B, _, H, W = x_nchw.shape
    x = jnp.transpose(x_nchw, (0, 2, 3, 1)).astype(jnp.bfloat16)  # NCHW->NHWC

    # stem: conv1_1 (3x3/s2) + bn1 + relu, then 3x3/s2 max-pool
    x = conv3x3_strided_affine(x, P["stem_w"], P["stem_s"], P["stem_h"],
                               stride=2, padding=1, relu=True)     # H/2
    x = maxpool_3x3_s2(x)                                          # H/4

    e = x
    for blk in P["layer1"]:
        e = bottleneck_forward(e, blk)
    for blk in P["layer2"]:
        e = bottleneck_forward(e, blk)
    e2 = e                                       # (B, H/8,  W/8,  512)
    for blk in P["layer3"]:
        e = bottleneck_forward(e, blk)
    e3 = e                                       # (B, H/16, W/16, 1024)
    for blk in P["layer4"]:
        e = bottleneck_forward(e, blk)
    e4 = e                                       # (B, H/16, W/16, 2048)

    d4 = conv1x1_affine(e4, P["decoder4"]["w"], P["decoder4"]["scale"],
                        P["decoder4"]["shift"], relu=True)
    d3 = conv1x1_affine(e3, P["decoder3"]["w"], P["decoder3"]["scale"],
                        P["decoder3"]["shift"], residual=d4, relu=True,
                        res_mode="post_act")     # decoder3(e3) + d4 fused

    if (H // 8) != 2 * d3.shape[1] or (W // 8) != 2 * d3.shape[2]:
        # TODO(synk): general (non-2x) bilinear resize not implemented.
        raise NotImplementedError("input H and W must be divisible by 16")
    up = bilinear_upsample_2x(d3)                # (B, H/8, W/8, 256)

    d2 = conv1x1_affine(e2, P["decoder2"]["w"], P["decoder2"]["scale"],
                        P["decoder2"]["shift"], residual=up, relu=True,
                        res_mode="post_act")     # decoder2(e2) + upsample fused

    d1 = conv3x3_affine(d2, P["conn_w"], jnp.ones((32,), jnp.float32),
                        P["conn_b"], dil=1, relu=False)   # (B, H/8, W/8, 32)

    h8, w8 = H // 8, W // 8
    # bg/fg 1x1 heads packed into one lane-dense matmul (N padded internally)
    cam2 = matmul_affine(d1.reshape(B * h8 * w8, 32), P["head_w"],
                         jnp.ones((2,), jnp.float32), P["head_b"])
    cam = jnp.transpose(cam2.reshape(B, h8, w8, 2),
                        (0, 3, 1, 2)).astype(jnp.float32)  # (B, 2, H/8, W/8)

    means = mean_over_last(cam.reshape(B * 2, h8 * w8))
    output = means.reshape(B, 2, 1, 1)
    return output, cam


# ----------------------------------------------------------------------------
if __name__ == "__main__":
    key = jax.random.PRNGKey(0)
    pkey, xkey = jax.random.split(key)
    params = init_edresnet(pkey)

    B, Cin, H, W = 2, 3, 64, 64
    x = jax.random.normal(xkey, (B, Cin, H, W), jnp.float32)

    output, cam = edresnet_forward(params, x)
    output, cam = jax.block_until_ready((output, cam))

    assert output.shape == (B, 2, 1, 1), output.shape
    assert cam.shape == (B, 2, H // 8, W // 8), cam.shape
    assert bool(jnp.isfinite(output).all()) and bool(jnp.isfinite(cam).all())
    print("KERNEL_OK")
</pallas_src>

<mosaic_0001>
module attributes {stable_mosaic.version = 11 : i64} {
  func.func @_matmul_kernel(%arg0: i32, %arg1: i32, %arg2: i32, %arg3: memref<256x27xbf16, #tpu.memory_space<vmem>>, %arg4: memref<27x128xbf16, #tpu.memory_space<vmem>>, %arg5: memref<1x128xf32, #tpu.memory_space<vmem>>, %arg6: memref<1x128xf32, #tpu.memory_space<vmem>>, %arg7: memref<256x128xbf16, #tpu.memory_space<vmem>>, %arg8: memref<256x128xf32, #tpu.memory_space<vmem>>) attributes {dimension_semantics = [#tpu.dimension_semantics<parallel>, #tpu.dimension_semantics<parallel>, #tpu.dimension_semantics<arbitrary>], iteration_bounds = array<i64: 8, 1, 1>, scalar_prefetch = 0 : i64, scratch_operands = 1 : i64, tpu.core_type = #tpu.core_type<tc>, window_params = [{transform_indices = @transform_0, window_bounds = array<i64: 256, 27>}, {transform_indices = @transform_1, window_bounds = array<i64: 27, 128>}, {transform_indices = @transform_2, window_bounds = array<i64: 1, 128>}, {transform_indices = @transform_3, window_bounds = array<i64: 1, 128>}, {transform_indices = @transform_4, window_bounds = array<i64: 256, 128>}]} {
    %c0_i32 = arith.constant 0 : i32
    %0 = arith.cmpi eq, %arg2, %c0_i32 : i32
    %1 = arith.extui %0 : i1 to i32
    %c0_i32_0 = arith.constant 0 : i32
    %2 = arith.cmpi ne, %1, %c0_i32_0 : i32
    scf.if %2 {
      %cst_10 = arith.constant 0.000000e+00 : f32
      %12 = vector.broadcast %cst_10 : f32 to vector<256x128xf32>
      %c0_11 = arith.constant 0 : index
      %c0_12 = arith.constant 0 : index
      %13 = vector.load %arg8[%c0_11, %c0_12] : memref<256x128xf32, #tpu.memory_space<vmem>>, vector<256x128xf32>
      tpu.vector_store %arg8[%c0_11, %c0_12], %12 {strides = array<i32>} : memref<256x128xf32, #tpu.memory_space<vmem>>, vector<256x128xf32>,
    } else {
    }
    %c0 = arith.constant 0 : index
    %c0_1 = arith.constant 0 : index
    %3 = vector.load %arg8[%c0, %c0_1] : memref<256x128xf32, #tpu.memory_space<vmem>>, vector<256x128xf32>
    %c0_2 = arith.constant 0 : index
    %c0_3 = arith.constant 0 : index
    %4 = vector.load %arg3[%c0_2, %c0_3] : memref<256x27xbf16, #tpu.memory_space<vmem>>, vector<256x27xbf16>
    %c0_4 = arith.constant 0 : index
    %c0_5 = arith.constant 0 : index
    %5 = vector.load %arg4[%c0_4, %c0_5] : memref<27x128xbf16, #tpu.memory_space<vmem>>, vector<27x128xbf16>
    %cst = arith.constant dense<0.000000e+00> : vector<256x128xf32>
    %6 = tpu.matmul %4, %5, %cst {dimension_numbers = #tpu.dot_dimension_numbers<[1], [0], [0], [1], [0, 0, 1, 1], [], []>} : vector<256x27xbf16>, vector<27x128xbf16>, vector<256x128xf32> -> vector<256x128xf32>
    %7 = arith.addf %3, %6 : vector<256x128xf32>
    %c0_6 = arith.constant 0 : index
    %c0_7 = arith.constant 0 : index
    %8 = vector.load %arg8[%c0_6, %c0_7] : memref<256x128xf32, #tpu.memory_space<vmem>>, vector<256x128xf32>
    tpu.vector_store %arg8[%c0_6, %c0_7], %7 {strides = array<i32>} : memref<256x128xf32, #tpu.memory_space<vmem>>, vector<256x128xf32>,
    %c0_i32_8 = arith.constant 0 : i32
    %9 = arith.cmpi eq, %arg2, %c0_i32_8 : i32
    %10 = arith.extui %9 : i1 to i32
    %c0_i32_9 = arith.constant 0 : i32
    %11 = arith.cmpi ne, %10, %c0_i32_9 : i32
    scf.if %11 {
      %c0_10 = arith.constant 0 : index
      %c0_11 = arith.constant 0 : index
      %12 = vector.load %arg8[%c0_10, %c0_11] : memref<256x128xf32, #tpu.memory_space<vmem>>, vector<256x128xf32>
      %c0_12 = arith.constant 0 : index
      %c0_13 = arith.constant 0 : index
      %13 = vector.load %arg5[%c0_12, %c0_13] : memref<1x128xf32, #tpu.memory_space<vmem>>, vector<1x128xf32>
      %14 = vector.broadcast %13 : vector<1x128xf32> to vector<256x128xf32>
      %15 = arith.mulf %12, %14 : vector<256x128xf32>
      %c0_14 = arith.constant 0 : index
      %c0_15 = arith.constant 0 : index
      %16 = vector.load %arg6[%c0_14, %c0_15] : memref<1x128xf32, #tpu.memory_space<vmem>>, vector<1x128xf32>
      %17 = vector.broadcast %16 : vector<1x128xf32> to vector<256x128xf32>
      %18 = arith.addf %15, %17 : vector<256x128xf32>
      %cst_16 = arith.constant 0.000000e+00 : f32
      %19 = vector.broadcast %cst_16 : f32 to vector<256x128xf32>
      %20 = arith.maximumf %18, %19 : vector<256x128xf32>
      %21 = arith.truncf %20 : vector<256x128xf32> to vector<256x128xbf16>
      %c0_17 = arith.constant 0 : index
      %c0_18 = arith.constant 0 : index
      %22 = vector.load %arg7[%c0_17, %c0_18] : memref<256x128xbf16, #tpu.memory_space<vmem>>, vector<256x128xbf16>
      tpu.vector_store %arg7[%c0_17, %c0_18], %21 {strides = array<i32>} : memref<256x128xbf16, #tpu.memory_space<vmem>>, vector<256x128xbf16>,
    } else {
    }
    return
  }
  func.func @transform_0(%arg0: i32, %arg1: i32, %arg2: i32) -> (i32, i32) {
    %c0_i32 = arith.constant 0 : i32
    return %arg0, %arg2 : i32, i32
  }
  func.func @transform_1(%arg0: i32, %arg1: i32, %arg2: i32) -> (i32, i32) {
    %c0_i32 = arith.constant 0 : i32
    return %arg2, %arg1 : i32, i32
  }
  func.func @transform_2(%arg0: i32, %arg1: i32, %arg2: i32) -> (i32, i32) {
    %c0_i32 = arith.constant 0 : i32
    %c0_i32_0 = arith.constant 0 : i32
    return %c0_i32, %arg1 : i32, i32
  }
  func.func @transform_3(%arg0: i32, %arg1: i32, %arg2: i32) -> (i32, i32) {
    %c0_i32 = arith.constant 0 : i32
    %c0_i32_0 = arith.constant 0 : i32
    return %c0_i32, %arg1 : i32, i32
  }
  func.func @transform_4(%arg0: i32, %arg1: i32, %arg2: i32) -> (i32, i32) {
    %c0_i32 = arith.constant 0 : i32
    return %arg0, %arg1 : i32, i32
  }
}

</mosaic_0001>

<llo_original>
// kernel: matmul_affine.1
$region0: #{matmul_affine.1}
  #allocation0 [shape = 'u32[]', space=smem, size = 0x4, offset = 0x4, fixed_abs, tag = 'smem constant byte address 0x4 - core index']
  #allocation1 [shape = 'u32[144,128]{1,0:T(1,128)}', space=vmem, size = 0x12000, scoped, tag = 'internal scratch']
  #allocation2 [shape = 'f32[256,128]{1,0:T(8,128)}', space=vmem, size = 0x20000, scoped, tag = 'scratch operand']
  %s0 = inlined_call_operand.vmem [shape: bf16[2048,27], index: 0, kind: input, shape index: {}]
  %s1 = inlined_call_operand.vmem [shape: bf16[27,128], index: 1, kind: input, shape index: {}]
  %s2 = inlined_call_operand.vmem [shape: f32[1,128], index: 2, kind: input, shape index: {}]
  %s3 = inlined_call_operand.vmem [shape: f32[1,128], index: 3, kind: input, shape index: {}]
  %s4 = inlined_call_operand.vmem [shape: bf16[2048,128], index: 4, kind: output, shape index: {}]
  %s5 = sld [smem:[#allocation0]]
  $region57: #{matmul_affine.1} parent=0
    _
  %s7 = ssub.s32 1, %s5
  %s8 = scalar_select 0, %s7, %s5
  loop: start=0, step=1, limit=10
  $region2: #{matmul_affine.1} parent=0 // loop_pre_header
    _
  $region3: #{matmul_affine.1} parent=0 // loop_header
    %s10 = sphi 0, %s14
    %p11 = scmp.ge.s32.totalorder %s10, 10
    %s17 = sphi 0, %s36
    %s18 = sphi 0, %s32
    %s19 = sphi 0, %s28
    %s20 = sphi 0, %s17
    %s21 = sphi 0, %s18
    %s22 = sphi 0, %s19
    %s23 = sphi 0, %s20
    %s24 = sphi 0, %s21
    %s25 = sphi 0, %s22
    %s41 = sphi 0, %s43
    %s44 = sphi 0, %s41
    %s45 = sphi 0, %s44
    %s61 = sphi 0, %s45
    %s69 = sphi 0, %s71
    %s72 = sphi 0, %s69
    %s73 = sphi 0, %s72
    %s89 = sphi 0, %s73
    %s95 = sphi 0, %s97
    %s98 = sphi 0, %s95
    %s99 = sphi 0, %s98
    %s115 = sphi 0, %s99
    %s121 = sphi 0, %s123
    %s124 = sphi 0, %s121
    %s125 = sphi 0, %s124
    %s141 = sphi 0, %s125
    %s149 = sphi 0, %s151
    %s152 = sphi 0, %s149
    %s153 = sphi 0, %s152
    %s169 = sphi 0, %s153
  $region4: #{matmul_affine.1} parent=0 // loop_header_branch
    %13 = sbr.rel (%p11) target = $region8
  $region5: #{matmul_affine.1} parent=0 // loop_body
    %s15 = ssub.s32 %s10, 1
    %s16 = ssub.s32 %s10, 2
    %s26 = sadd.s32 1, %s19
    %p27 = scmp.ge.s32.totalorder %s26, 1
    %s28 = scalar_select %p27, 0, %s26
    %s29 = sadd.s32 1, %s18
    %s30 = scalar_select %p27, %s29, %s18
    %p31 = scmp.ge.s32.totalorder %s30, 1
    %s32 = scalar_select %p31, 0, %s30
    %s33 = sadd.s32 1, %s17
    %s34 = scalar_select %p31, %s33, %s17
    %p35 = scmp.ge.s32.totalorder %s34, 8
    %s36 = scalar_select %p35, 0, %s34
    %s37 = ssub.s32 %s17, %s36
    %s38 = ssub.s32 %s19, %s28
    %s39 = sor.u32 %s37, %s38
    %p40 = scmp.eq.s32.totalorder %s39, 0
    %s42 = sadd.s32 %s41, 1
    %s43 = scalar_select %p40, %s41, %s42
    %p46 = pneg %p40
    %p47 = scmp.eq.s32.totalorder %s10, 7
    %p48 = por %p46, %p47
    %p49 = scmp.ne.s32.totalorder %s41, %s44
    %p50 = scmp.eq.s32.totalorder %s10, 0
    %p51 = por %p49, %p50
    %p52 = scmp.ne.s32.totalorder %s41, %s44
    %p53 = scmp.eq.s32.totalorder %s15, 7
    %p54 = por %p52, %p53
    %p55 = scmp.ne.s32.totalorder %s44, %s45
    %p56 = scmp.eq.s32.totalorder %s15, 0
    %p57 = por %p55, %p56
    %p58 = scmp.ne.s32.totalorder %s44, %s45
    %p59 = scmp.eq.s32.totalorder %s16, 7
    %p60 = por %p58, %p59
    %p62 = scmp.ne.s32.totalorder %s45, %s61
    %p63 = scmp.eq.s32.totalorder %s16, 0
    %p64 = por %p62, %p63
    %s65 = ssub.s32 %s19, %s28
    %s66 = ssub.s32 %s18, %s32
    %s67 = sor.u32 %s65, %s66
    %p68 = scmp.eq.s32.totalorder %s67, 0
    %s70 = sadd.s32 %s69, 1
    %s71 = scalar_select %p68, %s69, %s70
    %p74 = pneg %p68
    %p75 = scmp.eq.s32.totalorder %s10, 7
    %p76 = por %p74, %p75
    %p77 = scmp.ne.s32.totalorder %s69, %s72
    %p78 = scmp.eq.s32.totalorder %s10, 0
    %p79 = por %p77, %p78
    %p80 = scmp.ne.s32.totalorder %s69, %s72
    %p81 = scmp.eq.s32.totalorder %s15, 7
    %p82 = por %p80, %p81
    %p83 = scmp.ne.s32.totalorder %s72, %s73
    %p84 = scmp.eq.s32.totalorder %s15, 0
    %p85 = por %p83, %p84
    %p86 = scmp.ne.s32.totalorder %s72, %s73
    %p87 = scmp.eq.s32.totalorder %s16, 7
    %p88 = por %p86, %p87
    %p90 = scmp.ne.s32.totalorder %s73, %s89
    %p91 = scmp.eq.s32.totalorder %s16, 0
    %p92 = por %p90, %p91
    %s93 = ssub.s32 %s18, %s32
    %p94 = scmp.eq.s32.totalorder %s93, 0
    %s96 = sadd.s32 %s95, 1
    %s97 = scalar_select %p94, %s95, %s96
    %p100 = pneg %p94
    %p101 = scmp.eq.s32.totalorder %s10, 7
    %p102 = por %p100, %p101
    %p103 = scmp.ne.s32.totalorder %s95, %s98
    %p104 = scmp.eq.s32.totalorder %s10, 0
    %p105 = por %p103, %p104
    %p106 = scmp.ne.s32.totalorder %s95, %s98
    %p107 = scmp.eq.s32.totalorder %s15, 7
    %p108 = por %p106, %p107
    %p109 = scmp.ne.s32.totalorder %s98, %s99
    %p110 = scmp.eq.s32.totalorder %s15, 0
    %p111 = por %p109, %p110
    %p112 = scmp.ne.s32.totalorder %s98, %s99
    %p113 = scmp.eq.s32.totalorder %s16, 7
    %p114 = por %p112, %p113
    %p116 = scmp.ne.s32.totalorder %s99, %s115
    %p117 = scmp.eq.s32.totalorder %s16, 0
    %p118 = por %p116, %p117
    %s119 = ssub.s32 %s18, %s32
    %p120 = scmp.eq.s32.totalorder %s119, 0
    %s122 = sadd.s32 %s121, 1
    %s123 = scalar_select %p120, %s121, %s122
    %p126 = pneg %p120
    %p127 = scmp.eq.s32.totalorder %s10, 7
    %p128 = por %p126, %p127
    %p129 = scmp.ne.s32.totalorder %s121, %s124
    %p130 = scmp.eq.s32.totalorder %s10, 0
    %p131 = por %p129, %p130
    %p132 = scmp.ne.s32.totalorder %s121, %s124
    %p133 = scmp.eq.s32.totalorder %s15, 7
    %p134 = por %p132, %p133
    %p135 = scmp.ne.s32.totalorder %s124, %s125
    %p136 = scmp.eq.s32.totalorder %s15, 0
    %p137 = por %p135, %p136
    %p138 = scmp.ne.s32.totalorder %s124, %s125
    %p139 = scmp.eq.s32.totalorder %s16, 7
    %p140 = por %p138, %p139
    %p142 = scmp.ne.s32.totalorder %s125, %s141
    %p143 = scmp.eq.s32.totalorder %s16, 0
    %p144 = por %p142, %p143
    %s145 = ssub.s32 %s17, %s36
    %s146 = ssub.s32 %s18, %s32
    %s147 = sor.u32 %s145, %s146
    %p148 = scmp.eq.s32.totalorder %s147, 0
    %s150 = sadd.s32 %s149, 1
    %s151 = scalar_select %p148, %s149, %s150
    %p154 = pneg %p148
    %p155 = scmp.eq.s32.totalorder %s10, 7
    %p156 = por %p154, %p155
    %p157 = scmp.ne.s32.totalorder %s149, %s152
    %p158 = scmp.eq.s32.totalorder %s10, 0
    %p159 = por %p157, %p158
    %p160 = scmp.ne.s32.totalorder %s149, %s152
    %p161 = scmp.eq.s32.totalorder %s15, 7
    %p162 = por %p160, %p161
    %p163 = scmp.ne.s32.totalorder %s152, %s153
    %p164 = scmp.eq.s32.totalorder %s15, 0
    %p165 = por %p163, %p164
    %p166 = scmp.ne.s32.totalorder %s152, %s153
    %p167 = scmp.eq.s32.totalorder %s16, 7
    %p168 = por %p166, %p167
    %p170 = scmp.ne.s32.totalorder %s153, %s169
    %p171 = scmp.eq.s32.totalorder %s16, 0
    %p172 = por %p170, %p171
    %p173 = scmp.le.s32.totalorder 1, %s10
    %p174 = scmp.lt.s32.totalorder %s10, 9
    %p175 = pnand %p173, %p174
    %p176 = pneg %p175
    // Predicated region
    $region9: #{matmul_affine.1} parent=5 // pred_check
      _
    $region10: #{matmul_affine.1} parent=5 // pred_check_branch
      %178 = sbr.rel (%p175) target = $region12
    $region11: #{matmul_affine.1} parent=5 // pred_region
      %s179 = ssub.s32 %s10, 1
      // Predicated region
      $region13: #{matmul_affine.1} parent=11 // pred_check
        %p180 = pneg %p85
      $region14: #{matmul_affine.1} parent=11 // pred_check_branch
        %182 = sbr.rel (%p180) target = $region16
      $region15: #{matmul_affine.1} parent=11 // pred_region
        %s183 = smul.u32 4, %s22
        %p184 = scmp.lt.s32.totalorder %s183, 3
        %s185 = scalar_select %p184, %s183, 3
        %p186 = scmp.lt.s32.totalorder %s21, 0
        %s187 = scalar_select %p186, %s21, 0
        %s188 = sadd.s32 %s187, %s185
        %s189 = smul.addr %s188, 4
        %s190 = scalar_lea.vmem %s1, %s189
        %s191 = smul.u32 4, %s22
      $region16: #{matmul_affine.1} parent=11 // pred_fallthru
        _
      // Predicated region
      $region17: #{matmul_affine.1} parent=11 // pred_check
        %p192 = pneg %p111
      $region18: #{matmul_affine.1} parent=11 // pred_check_branch
        %194 = sbr.rel (%p192) target = $region20
      $region19: #{matmul_affine.1} parent=11 // pred_region
        %p195 = scmp.lt.s32.totalorder %s21, 0
        %s196 = scalar_select %p195, %s21, 0
        %s197 = scalar_lea.vmem %s2, %s196
      $region20: #{matmul_affine.1} parent=11 // pred_fallthru
        _
      // Predicated region
      $region21: #{matmul_affine.1} parent=11 // pred_check
        %p198 = pneg %p137
      $region22: #{matmul_affine.1} parent=11 // pred_check_branch
        %200 = sbr.rel (%p198) target = $region24
      $region23: #{matmul_affine.1} parent=11 // pred_region
        %p201 = scmp.lt.s32.totalorder %s21, 0
        %s202 = scalar_select %p201, %s21, 0
        %s203 = scalar_lea.vmem %s3, %s202
      $region24: #{matmul_affine.1} parent=11 // pred_fallthru
        _
    $region12: #{matmul_affine.1} parent=5 // pred_fallthru
      _
    %p204 = scmp.lt.s32.totalorder %s10, 8
    // Predicated region
    $region25: #{matmul_affine.1} parent=5 // pred_check
      %p205 = pneg %p204
    $region26: #{matmul_affine.1} parent=5 // pred_check_branch
      %207 = sbr.rel (%p205) target = $region28
    $region27: #{matmul_affine.1} parent=5 // pred_region
      // Predicated region
      $region29: #{matmul_affine.1} parent=27 // pred_check
        %p208 = pneg %p51
      $region30: #{matmul_affine.1} parent=27 // pred_check_branch
        %210 = sbr.rel (%p208) target = $region32
      $region31: #{matmul_affine.1} parent=27 // pred_region
        %s211 = smul.u32 32, %s17
        %p212 = scmp.lt.s32.totalorder %s211, 255
        %s213 = scalar_select %p212, %s211, 255
        %p214 = scmp.lt.s32.totalorder %s19, 0
        %s215 = scalar_select %p214, %s19, 0
        %s216 = sadd.s32 %s215, %s213
        %s217 = smul.addr %s216, 4
        %s218 = scalar_lea.vmem %s0, %s217
        %s219 = smul.u32 32, %s17
      $region32: #{matmul_affine.1} parent=27 // pred_fallthru
        _
    $region28: #{matmul_affine.1} parent=5 // pred_fallthru
      _
    %p220 = scmp.le.s32.totalorder 1, %s10
    %p221 = scmp.lt.s32.totalorder %s10, 9
    %p222 = pnand %p220, %p221
    %p223 = pneg %p222
    // Predicated region
    $region33: #{matmul_affine.1} parent=5 // pred_check
      _
    $region34: #{matmul_affine.1} parent=5 // pred_check_branch
      %225 = sbr.rel (%p222) target = $region36
    $region35: #{matmul_affine.1} parent=5 // pred_region
      %s226 = ssub.s32 %s10, 1
      %s227 = smul.u32 32, %s20
      %p228 = scmp.lt.s32.totalorder %s227, 255
      %s229 = scalar_select %p228, %s227, 255
      %p230 = scmp.lt.s32.totalorder %s22, 0
      %s231 = scalar_select %p230, %s22, 0
      %s232 = sadd.s32 %s231, %s229
      %s233 = smul.addr %s232, 4
      %s234 = scalar_lea.vmem %s0, %s233
      %p235 = pneg %p57
      %p236 = pneg %p54
      %s237 = smul.u32 4, %s22
      %p238 = scmp.lt.s32.totalorder %s237, 3
      %s239 = scalar_select %p238, %s237, 3
      %p240 = scmp.lt.s32.totalorder %s21, 0
      %s241 = scalar_select %p240, %s21, 0
      %s242 = sadd.s32 %s241, %s239
      %s243 = smul.addr %s242, 4
      %s244 = scalar_lea.vmem %s1, %s243
      %p245 = pneg %p85
      %p246 = pneg %p82
      %p247 = scmp.lt.s32.totalorder %s21, 0
      %s248 = scalar_select %p247, %s21, 0
      %s249 = scalar_lea.vmem %s2, %s248
      %p250 = pneg %p111
      %p251 = pneg %p108
      %p252 = scmp.lt.s32.totalorder %s21, 0
      %s253 = scalar_select %p252, %s21, 0
      %s254 = scalar_lea.vmem %s3, %s253
      %p255 = pneg %p137
      %p256 = pneg %p134
      %p257 = pneg %p165
      %p258 = pneg %p162
      %s259 = smul.u32 32, %s20
      %p260 = scmp.lt.s32.totalorder %s259, 255
      %s261 = scalar_select %p260, %s259, 255
      %p262 = scmp.lt.s32.totalorder %s21, 0
      %s263 = scalar_select %p262, %s21, 0
      %s264 = sadd.s32 %s263, %s261
      %s265 = smul.addr %s264, 4
      %s266 = scalar_lea.vmem %s4, %s265
      %s267 = smul.u32 32, %s20
      %p268 = scmp.lt.s32.totalorder %s267, 255
      %s269 = scalar_select %p268, %s267, 255
      %p270 = scmp.lt.s32.totalorder %s22, 0
      %s271 = scalar_select %p270, %s22, 0
      %s272 = sadd.s32 %s271, %s269
      %s273 = smul.addr %s272, 4
      %s274 = scalar_lea.vmem %s0, %s273
      %s275 = smul.u32 32, %s20
      %s276 = smul.u32 4, %s22
      %p277 = scmp.lt.s32.totalorder %s276, 3
      %s278 = scalar_select %p277, %s276, 3
      %p279 = scmp.lt.s32.totalorder %s21, 0
      %s280 = scalar_select %p279, %s21, 0
      %s281 = sadd.s32 %s280, %s278
      %s282 = smul.addr %s281, 4
      %s283 = scalar_lea.vmem %s1, %s282
      %s284 = smul.u32 4, %s22
      %p285 = scmp.lt.s32.totalorder %s21, 0
      %s286 = scalar_select %p285, %s21, 0
      %s287 = scalar_lea.vmem %s2, %s286
      %p288 = scmp.lt.s32.totalorder %s21, 0
      %s289 = scalar_select %p288, %s21, 0
      %s290 = scalar_lea.vmem %s3, %s289
      %s291 = smul.u32 32, %s20
      %p292 = scmp.lt.s32.totalorder %s291, 255
      %s293 = scalar_select %p292, %s291, 255
      %p294 = scmp.lt.s32.totalorder %s21, 0
      %s295 = scalar_select %p294, %s21, 0
      %s296 = sadd.s32 %s295, %s293
      %s297 = smul.addr %s296, 4
      %s298 = scalar_lea.vmem %s4, %s297
      %s299 = smul.u32 32, %s20
      %p301 = scmp.eq.s32.totalorder %s22, 0
      // Predicated region
      $region37: #{matmul_affine.1} parent=35 // pred_check
        %p302 = pneg %p301
      $region38: #{matmul_affine.1} parent=35 // pred_check_branch
        %304 = sbr.rel (%p302) target = $region40
      $region39: #{matmul_affine.1} parent=35 // pred_region
        %305 = vst [vmem:[#allocation2] sm:$0xff] 0.0
        %306 = vst [vmem:[#allocation2 + $0x8] sm:$0xff] 0.0
        %307 = vst [vmem:[#allocation2 + $0x10] sm:$0xff] 0.0
        %308 = vst [vmem:[#allocation2 + $0x18] sm:$0xff] 0.0
        %309 = vst [vmem:[#allocation2 + $0x20] sm:$0xff] 0.0
        %310 = vst [vmem:[#allocation2 + $0x28] sm:$0xff] 0.0
        %311 = vst [vmem:[#allocation2 + $0x30] sm:$0xff] 0.0
        %312 = vst [vmem:[#allocation2 + $0x38] sm:$0xff] 0.0
        %313 = vst [vmem:[#allocation2 + $0x40] sm:$0xff] 0.0
        %314 = vst [vmem:[#allocation2 + $0x48] sm:$0xff] 0.0
        %315 = vst [vmem:[#allocation2 + $0x50] sm:$0xff] 0.0
        %316 = vst [vmem:[#allocation2 + $0x58] sm:$0xff] 0.0
        %317 = vst [vmem:[#allocation2 + $0x60] sm:$0xff] 0.0
        %318 = vst [vmem:[#allocation2 + $0x68] sm:$0xff] 0.0
        %319 = vst [vmem:[#allocation2 + $0x70] sm:$0xff] 0.0
        %320 = vst [vmem:[#allocation2 + $0x78] sm:$0xff] 0.0
        %321 = vst [vmem:[#allocation2 + $0x80] sm:$0xff] 0.0
        %322 = vst [vmem:[#allocation2 + $0x88] sm:$0xff] 0.0
        %323 = vst [vmem:[#allocation2 + $0x90] sm:$0xff] 0.0
        %324 = vst [vmem:[#allocation2 + $0x98] sm:$0xff] 0.0
        %325 = vst [vmem:[#allocation2 + $0xa0] sm:$0xff] 0.0
        %326 = vst [vmem:[#allocation2 + $0xa8] sm:$0xff] 0.0
        %327 = vst [vmem:[#allocation2 + $0xb0] sm:$0xff] 0.0
        %328 = vst [vmem:[#allocation2 + $0xb8] sm:$0xff] 0.0
        %329 = vst [vmem:[#allocation2 + $0xc0] sm:$0xff] 0.0
        %330 = vst [vmem:[#allocation2 + $0xc8] sm:$0xff] 0.0
        %331 = vst [vmem:[#allocation2 + $0xd0] sm:$0xff] 0.0
        %332 = vst [vmem:[#allocation2 + $0xd8] sm:$0xff] 0.0
        %333 = vst [vmem:[#allocation2 + $0xe0] sm:$0xff] 0.0
        %334 = vst [vmem:[#allocation2 + $0xe8] sm:$0xff] 0.0
        %335 = vst [vmem:[#allocation2 + $0xf0] sm:$0xff] 0.0
        %336 = vst [vmem:[#allocation2 + $0xf8] sm:$0xff] 0.0
      $region40: #{matmul_affine.1} parent=35 // pred_fallthru
        _
      %v337 = vld [vmem:[#allocation2] sm:$0xff]
      %v338 = vld [vmem:[#allocation2 + $0x8] sm:$0xff]
      %v339 = vld [vmem:[#allocation2 + $0x10] sm:$0xff]
      %v340 = vld [vmem:[#allocation2 + $0x18] sm:$0xff]
      %v341 = vld [vmem:[#allocation2 + $0x20] sm:$0xff]
      %v342 = vld [vmem:[#allocation2 + $0x28] sm:$0xff]
      %v343 = vld [vmem:[#allocation2 + $0x30] sm:$0xff]
      %v344 = vld [vmem:[#allocation2 + $0x38] sm:$0xff]
      %v345 = vld [vmem:[#allocation2 + $0x40] sm:$0xff]
      %v346 = vld [vmem:[#allocation2 + $0x48] sm:$0xff]
      %v347 = vld [vmem:[#allocation2 + $0x50] sm:$0xff]
      %v348 = vld [vmem:[#allocation2 + $0x58] sm:$0xff]
      %v349 = vld [vmem:[#allocation2 + $0x60] sm:$0xff]
      %v350 = vld [vmem:[#allocation2 + $0x68] sm:$0xff]
      %v351 = vld [vmem:[#allocation2 + $0x70] sm:$0xff]
      %v352 = vld [vmem:[#allocation2 + $0x78] sm:$0xff]
      %v353 = vld [vmem:[#allocation2 + $0x80] sm:$0xff]
      %v354 = vld [vmem:[#allocation2 + $0x88] sm:$0xff]
      %v355 = vld [vmem:[#allocation2 + $0x90] sm:$0xff]
      %v356 = vld [vmem:[#allocation2 + $0x98] sm:$0xff]
      %v357 = vld [vmem:[#allocation2 + $0xa0] sm:$0xff]
      %v358 = vld [vmem:[#allocation2 + $0xa8] sm:$0xff]
      %v359 = vld [vmem:[#allocation2 + $0xb0] sm:$0xff]
      %v360 = vld [vmem:[#allocation2 + $0xb8] sm:$0xff]
      %v361 = vld [vmem:[#allocation2 + $0xc0] sm:$0xff]
      %v362 = vld [vmem:[#allocation2 + $0xc8] sm:$0xff]
      %v363 = vld [vmem:[#allocation2 + $0xd0] sm:$0xff]
      %v364 = vld [vmem:[#allocation2 + $0xd8] sm:$0xff]
      %v365 = vld [vmem:[#allocation2 + $0xe0] sm:$0xff]
      %v366 = vld [vmem:[#allocation2 + $0xe8] sm:$0xff]
      %v367 = vld [vmem:[#allocation2 + $0xf0] sm:$0xff]
      %v368 = vld [vmem:[#allocation2 + $0xf8] sm:$0xff]
      %v369 = vld [vmem:[%s274] sm:$0xf]
      %v370 = vld [vmem:[%s274 + $0x4] sm:$0xf]
      %v371 = vld [vmem:[%s274 + $0x8] sm:$0xf]
      %v372 = vld [vmem:[%s274 + $0xc] sm:$0xf]
      %v373 = vld [vmem:[%s274 + $0x10] sm:$0xf]
      %v374 = vld [vmem:[%s274 + $0x14] sm:$0xf]
      %v375 = vld [vmem:[%s274 + $0x18] sm:$0xf]
      %v376 = vld [vmem:[%s274 + $0x1c] sm:$0xf]
      %v377 = vld [vmem:[%s274 + $0x20] sm:$0xf]
      %v378 = vld [vmem:[%s274 + $0x24] sm:$0xf]
      %v379 = vld [vmem:[%s274 + $0x28] sm:$0xf]
      %v380 = vld [vmem:[%s274 + $0x2c] sm:$0xf]
      %v381 = vld [vmem:[%s274 + $0x30] sm:$0xf]
      %v382 = vld [vmem:[%s274 + $0x34] sm:$0xf]
      %v383 = vld [vmem:[%s274 + $0x38] sm:$0xf]
      %v384 = vld [vmem:[%s274 + $0x3c] sm:$0xf]
      %v385 = vld [vmem:[%s274 + $0x40] sm:$0xf]
      %v386 = vld [vmem:[%s274 + $0x44] sm:$0xf]
      %v387 = vld [vmem:[%s274 + $0x48] sm:$0xf]
      %v388 = vld [vmem:[%s274 + $0x4c] sm:$0xf]
      %v389 = vld [vmem:[%s274 + $0x50] sm:$0xf]
      %v390 = vld [vmem:[%s274 + $0x54] sm:$0xf]
      %v391 = vld [vmem:[%s274 + $0x58] sm:$0xf]
      %v392 = vld [vmem:[%s274 + $0x5c] sm:$0xf]
      %v393 = vld [vmem:[%s274 + $0x60] sm:$0xf]
      %v394 = vld [vmem:[%s274 + $0x64] sm:$0xf]
      %v395 = vld [vmem:[%s274 + $0x68] sm:$0xf]
      %v396 = vld [vmem:[%s274 + $0x6c] sm:$0xf]
      %v397 = vld [vmem:[%s274 + $0x70] sm:$0xf]
      %v398 = vld [vmem:[%s274 + $0x74] sm:$0xf]
      %v399 = vld [vmem:[%s274 + $0x78] sm:$0xf]
      %v400 = vld [vmem:[%s274 + $0x7c] sm:$0xf]
      %v401 = vld [vmem:[%s283] sm:$0xf]
      %v402 = vld [vmem:[%s283 + $0x4] sm:$0xf]
      %v403 = vld [vmem:[%s283 + $0x8] sm:$0xf]
      %v404 = vld [vmem:[%s283 + $0xc] sm:$0x3]
      %v437 = vunpack.c.l.b16 %v369
      %v438 = vunpack.c.l.b16 %v370
      %v439 = vunpack.c.l.b16 %v371
      %v440 = vunpack.c.l.b16 %v372
      %v441 = vunpack.c.l.b16 %v373
      %v442 = vunpack.c.l.b16 %v374
      %v443 = vunpack.c.l.b16 %v375
      %v444 = vunpack.c.l.b16 %v376
      %v445 = vunpack.c.l.b16 %v377
      %v446 = vunpack.c.l.b16 %v378
      %v447 = vunpack.c.l.b16 %v379
      %v448 = vunpack.c.l.b16 %v380
      %v449 = vunpack.c.l.b16 %v381
      %v450 = vunpack.c.l.b16 %v382
      %v451 = vunpack.c.l.b16 %v383
      %v452 = vunpack.c.l.b16 %v384
      %v453 = vunpack.c.l.b16 %v385
      %v454 = vunpack.c.l.b16 %v386
      %v455 = vunpack.c.l.b16 %v387
      %v456 = vunpack.c.l.b16 %v388
      %v457 = vunpack.c.l.b16 %v389
      %v458 = vunpack.c.l.b16 %v390
      %v459 = vunpack.c.l.b16 %v391
      %v460 = vunpack.c.l.b16 %v392
      %v461 = vunpack.c.l.b16 %v393
      %v462 = vunpack.c.l.b16 %v394
      %v463 = vunpack.c.l.b16 %v395
      %v464 = vunpack.c.l.b16 %v396
      %v465 = vunpack.c.l.b16 %v397
      %v466 = vunpack.c.l.b16 %v398
      %v467 = vunpack.c.l.b16 %v399
      %v468 = vunpack.c.l.b16 %v400
      %v469 = vpack.c.b16 %v438, %v437
      %v470 = vpack.c.b16 %v440, %v439
      %v471 = vpack.c.b16 %v442, %v441
      %v472 = vpack.c.b16 %v444, %v443
      %v473 = vpack.c.b16 %v446, %v445
      %v474 = vpack.c.b16 %v448, %v447
      %v475 = vpack.c.b16 %v450, %v449
      %v476 = vpack.c.b16 %v452, %v451
      %v477 = vpack.c.b16 %v454, %v453
      %v478 = vpack.c.b16 %v456, %v455
      %v479 = vpack.c.b16 %v458, %v457
      %v480 = vpack.c.b16 %v460, %v459
      %v481 = vpack.c.b16 %v462, %v461
      %v482 = vpack.c.b16 %v464, %v463
      %v483 = vpack.c.b16 %v466, %v465
      %v484 = vpack.c.b16 %v468, %v467
      %v489 = vunpack.c.l.b16 %v401
      %v490 = vunpack.c.l.b16 %v402
      %v491 = vunpack.c.l.b16 %v403
      %v492 = vunpack.c.l.b16 %v404
      %v493 = vpack.c.b16 %v490, %v489
      %v494 = vpack.c.b16 %v492, %v491
      %vm496 = vcmask 220160
      %v498 = vsel %vm496, %v469, 0
      %v501 = vsel %vm496, %v470, 0
      %v504 = vsel %vm496, %v471, 0
      %v507 = vsel %vm496, %v472, 0
      %v510 = vsel %vm496, %v473, 0
      %v513 = vsel %vm496, %v474, 0
      %v516 = vsel %vm496, %v475, 0
      %v519 = vsel %vm496, %v476, 0
      %v522 = vsel %vm496, %v477, 0
      %v525 = vsel %vm496, %v478, 0
      %v528 = vsel %vm496, %v479, 0
      %v531 = vsel %vm496, %v480, 0
      %v534 = vsel %vm496, %v481, 0
      %v537 = vsel %vm496, %v482, 0
      %v540 = vsel %vm496, %v483, 0
      %v543 = vsel %vm496, %v484, 0
      %vm545 = vcmask 1044480
      %vm546 = vcmask 1045504
      %v547 = vsel %vm545, 4294967295, 65535
      %v548 = vsel %vm546, %v547, 0
      %v550 = vand.u32 %v494, %v548
      %552 = vmatprep.subr.bf16.mxu0 0
      %553 = vmatpush1.bf16.msra.mxu0 0
      %554 = vmatprep.subr.bf16.mxu0 0
      %555 = vmatpush1.bf16.msra.mxu0 0
      %556 = vmatprep.subr.bf16.mxu0 0
      %557 = vmatpush1.bf16.msra.mxu0 0
      %558 = vmatprep.subr.bf16.mxu0 0
      %559 = vmatpush1.bf16.msra.mxu0 0
      %560 = vmatprep.subr.bf16.mxu0 0
      %561 = vmatpush1.bf16.msra.mxu0 0
      %562 = vmatprep.subr.bf16.mxu0 0
      %563 = vmatpush1.bf16.msra.mxu0 0
      %564 = vmatprep.subr.bf16.mxu0 0
      %565 = vmatpush1.bf16.msra.mxu0 %v550
      %566 = vmatprep.subr.bf16.mxu0 0
      %567 = vmatpush1.bf16.msra.mxu0 %v493
      %568 = vmatprep.subr.bf16.mxu0 0
      %569 = vmatpush2.bf16.msra.mxu0 0
      %570 = vmatprep.subr.bf16.mxu0 0
      %571 = vmatpush2.bf16.msra.mxu0 0
      %572 = vmatprep.subr.bf16.mxu0 0
      %573 = vmatpush2.bf16.msra.mxu0 0
      %574 = vmatprep.subr.bf16.mxu0 0
      %575 = vmatpush2.bf16.msra.mxu0 0
      %576 = vmatprep.subr.bf16.mxu0 0
      %577 = vmatpush2.bf16.msra.mxu0 0
      %578 = vmatprep.subr.bf16.mxu0 0
      %579 = vmatpush2.bf16.msra.mxu0 0
      %580 = vmatprep.subr.bf16.mxu0 0
      %581 = vmatpush2.bf16.msra.mxu0 0
      %582 = vmatprep.subr.bf16.mxu0 0
      %583 = vmatpush2.bf16.msra.mxu0 0
      %584 = vmatprep.mubr.bf16.mxu0 0
      %585 = vmatmul.mubr.bf16.gmra.mxu0 %v498
      %v586 = vpop.f32.mrf.mxu0
      %v587 = vadd.f32 0.0, %v586
      %v588 = vpop.f32.mrf.mxu0
      %v589 = vpop.f32.mrf.mxu0
      %v590 = vadd.f32 0.0, %v589
      %v591 = vpop.f32.mrf.mxu0
      %592 = vmatprep.mubr.bf16.mxu0 0
      %593 = vmatmul.mubr.bf16.gmra.mxu0 %v501
      %v594 = vpop.f32.mrf.mxu0
      %v595 = vadd.f32 0.0, %v594
      %v596 = vpop.f32.mrf.mxu0
      %v597 = vpop.f32.mrf.mxu0
      %v598 = vadd.f32 0.0, %v597
      %v599 = vpop.f32.mrf.mxu0
      %600 = vmatprep.mubr.bf16.mxu0 0
      %601 = vmatmul.mubr.bf16.gmra.mxu0 %v504
      %v602 = vpop.f32.mrf.mxu0
      %v603 = vadd.f32 0.0, %v602
      %v604 = vpop.f32.mrf.mxu0
      %v605 = vpop.f32.mrf.mxu0
      %v606 = vadd.f32 0.0, %v605
      %v607 = vpop.f32.mrf.mxu0
      %608 = vmatprep.mubr.bf16.mxu0 0
      %609 = vmatmul.mubr.bf16.gmra.mxu0 %v507
      %v610 = vpop.f32.mrf.mxu0
      %v611 = vadd.f32 0.0, %v610
      %v612 = vpop.f32.mrf.mxu0
      %v613 = vpop.f32.mrf.mxu0
      %v614 = vadd.f32 0.0, %v613
      %v615 = vpop.f32.mrf.mxu0
      %616 = vmatprep.mubr.bf16.mxu0 0
      %617 = vmatmul.mubr.bf16.gmra.mxu0 %v510
      %v618 = vpop.f32.mrf.mxu0
      %v619 = vadd.f32 0.0, %v618
      %v620 = vpop.f32.mrf.mxu0
      %v621 = vpop.f32.mrf.mxu0
      %v622 = vadd.f32 0.0, %v621
      %v623 = vpop.f32.mrf.mxu0
      %624 = vmatprep.mubr.bf16.mxu0 0
      %625 = vmatmul.mubr.bf16.gmra.mxu0 %v513
      %v626 = vpop.f32.mrf.mxu0
      %v627 = vadd.f32 0.0, %v626
      %v628 = vpop.f32.mrf.mxu0
      %v629 = vpop.f32.mrf.mxu0
      %v630 = vadd.f32 0.0, %v629
      %v631 = vpop.f32.mrf.mxu0
      %632 = vmatprep.mubr.bf16.mxu0 0
      %633 = vmatmul.mubr.bf16.gmra.mxu0 %v516
      %v634 = vpop.f32.mrf.mxu0
      %v635 = vadd.f32 0.0, %v634
      %v636 = vpop.f32.mrf.mxu0
      %v637 = vpop.f32.mrf.mxu0
      %v638 = vadd.f32 0.0, %v637
      %v639 = vpop.f32.mrf.mxu0
      %640 = vmatprep.mubr.bf16.mxu0 0
      %641 = vmatmul.mubr.bf16.gmra.mxu0 %v519
      %v642 = vpop.f32.mrf.mxu0
      %v643 = vadd.f32 0.0, %v642
      %v644 = vpop.f32.mrf.mxu0
      %v645 = vpop.f32.mrf.mxu0
      %v646 = vadd.f32 0.0, %v645
      %v647 = vpop.f32.mrf.mxu0
      %648 = vmatprep.mubr.bf16.mxu0 0
      %649 = vmatmul.mubr.bf16.gmra.mxu0 %v522
      %v650 = vpop.f32.mrf.mxu0
      %v651 = vadd.f32 0.0, %v650
      %v652 = vpop.f32.mrf.mxu0
      %v653 = vpop.f32.mrf.mxu0
      %v654 = vadd.f32 0.0, %v653
      %v655 = vpop.f32.mrf.mxu0
      %656 = vmatprep.mubr.bf16.mxu0 0
      %657 = vmatmul.mubr.bf16.gmra.mxu0 %v525
      %v658 = vpop.f32.mrf.mxu0
      %v659 = vadd.f32 0.0, %v658
      %v660 = vpop.f32.mrf.mxu0
      %v661 = vpop.f32.mrf.mxu0
      %v662 = vadd.f32 0.0, %v661
      %v663 = vpop.f32.mrf.mxu0
      %664 = vmatprep.mubr.bf16.mxu0 0
      %665 = vmatmul.mubr.bf16.gmra.mxu0 %v528
      %v666 = vpop.f32.mrf.mxu0
      %v667 = vadd.f32 0.0, %v666
      %v668 = vpop.f32.mrf.mxu0
      %v669 = vpop.f32.mrf.mxu0
      %v670 = vadd.f32 0.0, %v669
      %v671 = vpop.f32.mrf.mxu0
      %672 = vmatprep.mubr.bf16.mxu0 0
      %673 = vmatmul.mubr.bf16.gmra.mxu0 %v531
      %v674 = vpop.f32.mrf.mxu0
      %v675 = vadd.f32 0.0, %v674
      %v676 = vpop.f32.mrf.mxu0
      %v677 = vpop.f32.mrf.mxu0
      %v678 = vadd.f32 0.0, %v677
      %v679 = vpop.f32.mrf.mxu0
      %680 = vmatprep.mubr.bf16.mxu0 0
      %681 = vmatmul.mubr.bf16.gmra.mxu0 %v534
      %v682 = vpop.f32.mrf.mxu0
      %v683 = vadd.f32 0.0, %v682
      %v684 = vpop.f32.mrf.mxu0
      %v685 = vpop.f32.mrf.mxu0
      %v686 = vadd.f32 0.0, %v685
      %v687 = vpop.f32.mrf.mxu0
      %688 = vmatprep.mubr.bf16.mxu0 0
      %689 = vmatmul.mubr.bf16.gmra.mxu0 %v537
      %v690 = vpop.f32.mrf.mxu0
      %v691 = vadd.f32 0.0, %v690
      %v692 = vpop.f32.mrf.mxu0
      %v693 = vpop.f32.mrf.mxu0
      %v694 = vadd.f32 0.0, %v693
      %v695 = vpop.f32.mrf.mxu0
      %696 = vmatprep.mubr.bf16.mxu0 0
      %697 = vmatmul.mubr.bf16.gmra.mxu0 %v540
      %v698 = vpop.f32.mrf.mxu0
      %v699 = vadd.f32 0.0, %v698
      %v700 = vpop.f32.mrf.mxu0
      %v701 = vpop.f32.mrf.mxu0
      %v702 = vadd.f32 0.0, %v701
      %v703 = vpop.f32.mrf.mxu0
      %704 = vmatprep.mubr.bf16.mxu0 0
      %705 = vmatmul.mubr.bf16.gmra.mxu0 %v543
      %v706 = vpop.f32.mrf.mxu0
      %v707 = vadd.f32 0.0, %v706
      %v708 = vpop.f32.mrf.mxu0
      %v709 = vpop.f32.mrf.mxu0
      %v710 = vadd.f32 0.0, %v709
      %v711 = vpop.f32.mrf.mxu0
      %712 = vdwg.mxu0
      %v713 = vadd.f32 %v337, %v587
      %v714 = vadd.f32 %v338, %v590
      %v715 = vadd.f32 %v339, %v595
      %v716 = vadd.f32 %v340, %v598
      %v717 = vadd.f32 %v341, %v603
      %v718 = vadd.f32 %v342, %v606
      %v719 = vadd.f32 %v343, %v611
      %v720 = vadd.f32 %v344, %v614
      %v721 = vadd.f32 %v345, %v619
      %v722 = vadd.f32 %v346, %v622
      %v723 = vadd.f32 %v347, %v627
      %v724 = vadd.f32 %v348, %v630
      %v725 = vadd.f32 %v349, %v635
      %v726 = vadd.f32 %v350, %v638
      %v727 = vadd.f32 %v351, %v643
      %v728 = vadd.f32 %v352, %v646
      %v729 = vadd.f32 %v353, %v651
      %v730 = vadd.f32 %v354, %v654
      %v731 = vadd.f32 %v355, %v659
      %v732 = vadd.f32 %v356, %v662
      %v733 = vadd.f32 %v357, %v667
      %v734 = vadd.f32 %v358, %v670
      %v735 = vadd.f32 %v359, %v675
      %v736 = vadd.f32 %v360, %v678
      %v737 = vadd.f32 %v361, %v683
      %v738 = vadd.f32 %v362, %v686
      %v739 = vadd.f32 %v363, %v691
      %v740 = vadd.f32 %v364, %v694
      %v741 = vadd.f32 %v365, %v699
      %v742 = vadd.f32 %v366, %v702
      %v743 = vadd.f32 %v367, %v707
      %v744 = vadd.f32 %v368, %v710
      %745 = vst [vmem:[#allocation2] sm:$0xff] %v713
      %746 = vst [vmem:[#allocation2 + $0x8] sm:$0xff] %v714
      %747 = vst [vmem:[#allocation2 + $0x10] sm:$0xff] %v715
      %748 = vst [vmem:[#allocation2 + $0x18] sm:$0xff] %v716
      %749 = vst [vmem:[#allocation2 + $0x20] sm:$0xff] %v717
      %750 = vst [vmem:[#allocation2 + $0x28] sm:$0xff] %v718
      %751 = vst [vmem:[#allocation2 + $0x30] sm:$0xff] %v719
      %752 = vst [vmem:[#allocation2 + $0x38] sm:$0xff] %v720
      %753 = vst [vmem:[#allocation2 + $0x40] sm:$0xff] %v721
      %754 = vst [vmem:[#allocation2 + $0x48] sm:$0xff] %v722
      %755 = vst [vmem:[#allocation2 + $0x50] sm:$0xff] %v723
      %756 = vst [vmem:[#allocation2 + $0x58] sm:$0xff] %v724
      %757 = vst [vmem:[#allocation2 + $0x60] sm:$0xff] %v725
      %758 = vst [vmem:[#allocation2 + $0x68] sm:$0xff] %v726
      %759 = vst [vmem:[#allocation2 + $0x70] sm:$0xff] %v727
      %760 = vst [vmem:[#allocation2 + $0x78] sm:$0xff] %v728
      %761 = vst [vmem:[#allocation2 + $0x80] sm:$0xff] %v729
      %762 = vst [vmem:[#allocation2 + $0x88] sm:$0xff] %v730
      %763 = vst [vmem:[#allocation2 + $0x90] sm:$0xff] %v731
      %764 = vst [vmem:[#allocation2 + $0x98] sm:$0xff] %v732
      %765 = vst [vmem:[#allocation2 + $0xa0] sm:$0xff] %v733
      %766 = vst [vmem:[#allocation2 + $0xa8] sm:$0xff] %v734
      %767 = vst [vmem:[#allocation2 + $0xb0] sm:$0xff] %v735
      %768 = vst [vmem:[#allocation2 + $0xb8] sm:$0xff] %v736
      %769 = vst [vmem:[#allocation2 + $0xc0] sm:$0xff] %v737
      %770 = vst [vmem:[#allocation2 + $0xc8] sm:$0xff] %v738
      %771 = vst [vmem:[#allocation2 + $0xd0] sm:$0xff] %v739
      %772 = vst [vmem:[#allocation2 + $0xd8] sm:$0xff] %v740
      %773 = vst [vmem:[#allocation2 + $0xe0] sm:$0xff] %v741
      %774 = vst [vmem:[#allocation2 + $0xe8] sm:$0xff] %v742
      %775 = vst [vmem:[#allocation2 + $0xf0] sm:$0xff] %v743
      %776 = vst [vmem:[#allocation2 + $0xf8] sm:$0xff] %v744
      // Predicated region
      $region41: #{matmul_affine.1} parent=35 // pred_check
        %p777 = pneg %p301
      $region42: #{matmul_affine.1} parent=35 // pred_check_branch
        %779 = sbr.rel (%p777) target = $region44
      $region43: #{matmul_affine.1} parent=35 // pred_region
        %v780 = vld [vmem:[#allocation2] sm:$0xff]
        %v781 = vld [vmem:[#allocation2 + $0x8] sm:$0xff]
        %v782 = vld [vmem:[#allocation2 + $0x10] sm:$0xff]
        %v783 = vld [vmem:[#allocation2 + $0x18] sm:$0xff]
        %v784 = vld [vmem:[#allocation2 + $0x20] sm:$0xff]
        %v785 = vld [vmem:[#allocation2 + $0x28] sm:$0xff]
        %v786 = vld [vmem:[#allocation2 + $0x30] sm:$0xff]
        %v787 = vld [vmem:[#allocation2 + $0x38] sm:$0xff]
        %v788 = vld [vmem:[#allocation2 + $0x40] sm:$0xff]
        %v789 = vld [vmem:[#allocation2 + $0x48] sm:$0xff]
        %v790 = vld [vmem:[#allocation2 + $0x50] sm:$0xff]
        %v791 = vld [vmem:[#allocation2 + $0x58] sm:$0xff]
        %v792 = vld [vmem:[#allocation2 + $0x60] sm:$0xff]
        %v793 = vld [vmem:[#allocation2 + $0x68] sm:$0xff]
        %v794 = vld [vmem:[#allocation2 + $0x70] sm:$0xff]
        %v795 = vld [vmem:[#allocation2 + $0x78] sm:$0xff]
        %v796 = vld [vmem:[#allocation2 + $0x80] sm:$0xff]
        %v797 = vld [vmem:[#allocation2 + $0x88] sm:$0xff]
        %v798 = vld [vmem:[#allocation2 + $0x90] sm:$0xff]
        %v799 = vld [vmem:[#allocation2 + $0x98] sm:$0xff]
        %v800 = vld [vmem:[#allocation2 + $0xa0] sm:$0xff]
        %v801 = vld [vmem:[#allocation2 + $0xa8] sm:$0xff]
        %v802 = vld [vmem:[#allocation2 + $0xb0] sm:$0xff]
        %v803 = vld [vmem:[#allocation2 + $0xb8] sm:$0xff]
        %v804 = vld [vmem:[#allocation2 + $0xc0] sm:$0xff]
        %v805 = vld [vmem:[#allocation2 + $0xc8] sm:$0xff]
        %v806 = vld [vmem:[#allocation2 + $0xd0] sm:$0xff]
        %v807 = vld [vmem:[#allocation2 + $0xd8] sm:$0xff]
        %v808 = vld [vmem:[#allocation2 + $0xe0] sm:$0xff]
        %v809 = vld [vmem:[#allocation2 + $0xe8] sm:$0xff]
        %v810 = vld [vmem:[#allocation2 + $0xf0] sm:$0xff]
        %v811 = vld [vmem:[#allocation2 + $0xf8] sm:$0xff]
        %v812 = vld [vmem:[%s287] sm:$0x1]
        %v814 = vlaneseq
        %v815 = vshrl.u32 %v814, 7
        %v816 = vsub.s32 0, %v815
        %v817 = vrot.slane %v812, %v816
        %v819 = vmul.f32 %v780, %v817
        %v820 = vmul.f32 %v781, %v817
        %v821 = vmul.f32 %v782, %v817
        %v822 = vmul.f32 %v783, %v817
        %v823 = vmul.f32 %v784, %v817
        %v824 = vmul.f32 %v785, %v817
        %v825 = vmul.f32 %v786, %v817
        %v826 = vmul.f32 %v787, %v817
        %v827 = vmul.f32 %v788, %v817
        %v828 = vmul.f32 %v789, %v817
        %v829 = vmul.f32 %v790, %v817
        %v830 = vmul.f32 %v791, %v817
        %v831 = vmul.f32 %v792, %v817
        %v832 = vmul.f32 %v793, %v817
        %v833 = vmul.f32 %v794, %v817
        %v834 = vmul.f32 %v795, %v817
        %v835 = vmul.f32 %v796, %v817
        %v836 = vmul.f32 %v797, %v817
        %v837 = vmul.f32 %v798, %v817
        %v838 = vmul.f32 %v799, %v817
        %v839 = vmul.f32 %v800, %v817
        %v840 = vmul.f32 %v801, %v817
        %v841 = vmul.f32 %v802, %v817
        %v842 = vmul.f32 %v803, %v817
        %v843 = vmul.f32 %v804, %v817
        %v844 = vmul.f32 %v805, %v817
        %v845 = vmul.f32 %v806, %v817
        %v846 = vmul.f32 %v807, %v817
        %v847 = vmul.f32 %v808, %v817
        %v848 = vmul.f32 %v809, %v817
        %v849 = vmul.f32 %v810, %v817
        %v850 = vmul.f32 %v811, %v817
        %v851 = vld [vmem:[%s290] sm:$0x1]
        %v853 = vlaneseq
        %v854 = vshrl.u32 %v853, 7
        %v855 = vsub.s32 0, %v854
        %v856 = vrot.slane %v851, %v855
        %v858 = vadd.f32 %v819, %v856
        %v859 = vadd.f32 %v820, %v856
        %v860 = vadd.f32 %v821, %v856
        %v861 = vadd.f32 %v822, %v856
        %v862 = vadd.f32 %v823, %v856
        %v863 = vadd.f32 %v824, %v856
        %v864 = vadd.f32 %v825, %v856
        %v865 = vadd.f32 %v826, %v856
        %v866 = vadd.f32 %v827, %v856
        %v867 = vadd.f32 %v828, %v856
        %v868 = vadd.f32 %v829, %v856
        %v869 = vadd.f32 %v830, %v856
        %v870 = vadd.f32 %v831, %v856
        %v871 = vadd.f32 %v832, %v856
        %v872 = vadd.f32 %v833, %v856
        %v873 = vadd.f32 %v834, %v856
        %v874 = vadd.f32 %v835, %v856
        %v875 = vadd.f32 %v836, %v856
        %v876 = vadd.f32 %v837, %v856
        %v877 = vadd.f32 %v838, %v856
        %v878 = vadd.f32 %v839, %v856
        %v879 = vadd.f32 %v840, %v856
        %v880 = vadd.f32 %v841, %v856
        %v881 = vadd.f32 %v842, %v856
        %v882 = vadd.f32 %v843, %v856
        %v883 = vadd.f32 %v844, %v856
        %v884 = vadd.f32 %v845, %v856
        %v885 = vadd.f32 %v846, %v856
        %v886 = vadd.f32 %v847, %v856
        %v887 = vadd.f32 %v848, %v856
        %v888 = vadd.f32 %v849, %v856
        %v889 = vadd.f32 %v850, %v856
        %v890 = vmax.f32 %v858, 0.0
        %v891 = vmax.f32 %v859, 0.0
        %v892 = vmax.f32 %v860, 0.0
        %v893 = vmax.f32 %v861, 0.0
        %v894 = vmax.f32 %v862, 0.0
        %v895 = vmax.f32 %v863, 0.0
        %v896 = vmax.f32 %v864, 0.0
        %v897 = vmax.f32 %v865, 0.0
        %v898 = vmax.f32 %v866, 0.0
        %v899 = vmax.f32 %v867, 0.0
        %v900 = vmax.f32 %v868, 0.0
        %v901 = vmax.f32 %v869, 0.0
        %v902 = vmax.f32 %v870, 0.0
        %v903 = vmax.f32 %v871, 0.0
        %v904 = vmax.f32 %v872, 0.0
        %v905 = vmax.f32 %v873, 0.0
        %v906 = vmax.f32 %v874, 0.0
        %v907 = vmax.f32 %v875, 0.0
        %v908 = vmax.f32 %v876, 0.0
        %v909 = vmax.f32 %v877, 0.0
        %v910 = vmax.f32 %v878, 0.0
        %v911 = vmax.f32 %v879, 0.0
        %v912 = vmax.f32 %v880, 0.0
        %v913 = vmax.f32 %v881, 0.0
        %v914 = vmax.f32 %v882, 0.0
        %v915 = vmax.f32 %v883, 0.0
        %v916 = vmax.f32 %v884, 0.0
        %v917 = vmax.f32 %v885, 0.0
        %v918 = vmax.f32 %v886, 0.0
        %v919 = vmax.f32 %v887, 0.0
        %v920 = vmax.f32 %v888, 0.0
        %v921 = vmax.f32 %v889, 0.0
        %v922 = vpack.c.bf16 %v891, %v890
        %v923 = vpack.c.bf16 %v893, %v892
        %v924 = vpack.c.bf16 %v895, %v894
        %v925 = vpack.c.bf16 %v897, %v896
        %v926 = vpack.c.bf16 %v899, %v898
        %v927 = vpack.c.bf16 %v901, %v900
        %v928 = vpack.c.bf16 %v903, %v902
        %v929 = vpack.c.bf16 %v905, %v904
        %v930 = vpack.c.bf16 %v907, %v906
        %v931 = vpack.c.bf16 %v909, %v908
        %v932 = vpack.c.bf16 %v911, %v910
        %v933 = vpack.c.bf16 %v913, %v912
        %v934 = vpack.c.bf16 %v915, %v914
        %v935 = vpack.c.bf16 %v917, %v916
        %v936 = vpack.c.bf16 %v919, %v918
        %v937 = vpack.c.bf16 %v921, %v920
        %v954 = vunpack.c.l.b16 %v922
        %v955 = vunpack.c.h.b16 %v922
        %v956 = vunpack.c.l.b16 %v923
        %v957 = vunpack.c.h.b16 %v923
        %v958 = vunpack.c.l.b16 %v924
        %v959 = vunpack.c.h.b16 %v924
        %v960 = vunpack.c.l.b16 %v925
        %v961 = vunpack.c.h.b16 %v925
        %v962 = vunpack.c.l.b16 %v926
        %v963 = vunpack.c.h.b16 %v926
        %v964 = vunpack.c.l.b16 %v927
        %v965 = vunpack.c.h.b16 %v927
        %v966 = vunpack.c.l.b16 %v928
        %v967 = vunpack.c.h.b16 %v928
        %v968 = vunpack.c.l.b16 %v929
        %v969 = vunpack.c.h.b16 %v929
        %v970 = vunpack.c.l.b16 %v930
        %v971 = vunpack.c.h.b16 %v930
        %v972 = vunpack.c.l.b16 %v931
        %v973 = vunpack.c.h.b16 %v931
        %v974 = vunpack.c.l.b16 %v932
        %v975 = vunpack.c.h.b16 %v932
        %v976 = vunpack.c.l.b16 %v933
        %v977 = vunpack.c.h.b16 %v933
        %v978 = vunpack.c.l.b16 %v934
        %v979 = vunpack.c.h.b16 %v934
        %v980 = vunpack.c.l.b16 %v935
        %v981 = vunpack.c.h.b16 %v935
        %v982 = vunpack.c.l.b16 %v936
        %v983 = vunpack.c.h.b16 %v936
        %v984 = vunpack.c.l.b16 %v937
        %v985 = vunpack.c.h.b16 %v937
        %v986 = vpack.c.b16 %v954, %v954
        %v987 = vpack.c.b16 %v955, %v955
        %v988 = vpack.c.b16 %v956, %v956
        %v989 = vpack.c.b16 %v957, %v957
        %v990 = vpack.c.b16 %v958, %v958
        %v991 = vpack.c.b16 %v959, %v959
        %v992 = vpack.c.b16 %v960, %v960
        %v993 = vpack.c.b16 %v961, %v961
        %v994 = vpack.c.b16 %v962, %v962
        %v995 = vpack.c.b16 %v963, %v963
        %v996 = vpack.c.b16 %v964, %v964
        %v997 = vpack.c.b16 %v965, %v965
        %v998 = vpack.c.b16 %v966, %v966
        %v999 = vpack.c.b16 %v967, %v967
        %v1000 = vpack.c.b16 %v968, %v968
        %v1001 = vpack.c.b16 %v969, %v969
        %v1002 = vpack.c.b16 %v970, %v970
        %v1003 = vpack.c.b16 %v971, %v971
        %v1004 = vpack.c.b16 %v972, %v972
        %v1005 = vpack.c.b16 %v973, %v973
        %v1006 = vpack.c.b16 %v974, %v974
        %v1007 = vpack.c.b16 %v975, %v975
        %v1008 = vpack.c.b16 %v976, %v976
        %v1009 = vpack.c.b16 %v977, %v977
        %v1010 = vpack.c.b16 %v978, %v978
        %v1011 = vpack.c.b16 %v979, %v979
        %v1012 = vpack.c.b16 %v980, %v980
        %v1013 = vpack.c.b16 %v981, %v981
        %v1014 = vpack.c.b16 %v982, %v982
        %v1015 = vpack.c.b16 %v983, %v983
        %v1016 = vpack.c.b16 %v984, %v984
        %v1017 = vpack.c.b16 %v985, %v985
        %1050 = vst [vmem:[%s298] sm:$0xf] %v986
        %1051 = vst [vmem:[%s298 + $0x4] sm:$0xf] %v987
        %1052 = vst [vmem:[%s298 + $0x8] sm:$0xf] %v988
        %1053 = vst [vmem:[%s298 + $0xc] sm:$0xf] %v989
        %1054 = vst [vmem:[%s298 + $0x10] sm:$0xf] %v990
        %1055 = vst [vmem:[%s298 + $0x14] sm:$0xf] %v991
        %1056 = vst [vmem:[%s298 + $0x18] sm:$0xf] %v992
        %1057 = vst [vmem:[%s298 + $0x1c] sm:$0xf] %v993
        %1058 = vst [vmem:[%s298 + $0x20] sm:$0xf] %v994
        %1059 = vst [vmem:[%s298 + $0x24] sm:$0xf] %v995
        %1060 = vst [vmem:[%s298 + $0x28] sm:$0xf] %v996
        %1061 = vst [vmem:[%s298 + $0x2c] sm:$0xf] %v997
        %1062 = vst [vmem:[%s298 + $0x30] sm:$0xf] %v998
        %1063 = vst [vmem:[%s298 + $0x34] sm:$0xf] %v999
        %1064 = vst [vmem:[%s298 + $0x38] sm:$0xf] %v1000
        %1065 = vst [vmem:[%s298 + $0x3c] sm:$0xf] %v1001
        %1066 = vst [vmem:[%s298 + $0x40] sm:$0xf] %v1002
        %1067 = vst [vmem:[%s298 + $0x44] sm:$0xf] %v1003
        %1068 = vst [vmem:[%s298 + $0x48] sm:$0xf] %v1004
        %1069 = vst [vmem:[%s298 + $0x4c] sm:$0xf] %v1005
        %1070 = vst [vmem:[%s298 + $0x50] sm:$0xf] %v1006
        %1071 = vst [vmem:[%s298 + $0x54] sm:$0xf] %v1007
        %1072 = vst [vmem:[%s298 + $0x58] sm:$0xf] %v1008
        %1073 = vst [vmem:[%s298 + $0x5c] sm:$0xf] %v1009
        %1074 = vst [vmem:[%s298 + $0x60] sm:$0xf] %v1010
        %1075 = vst [vmem:[%s298 + $0x64] sm:$0xf] %v1011
        %1076 = vst [vmem:[%s298 + $0x68] sm:$0xf] %v1012
        %1077 = vst [vmem:[%s298 + $0x6c] sm:$0xf] %v1013
        %1078 = vst [vmem:[%s298 + $0x70] sm:$0xf] %v1014
        %1079 = vst [vmem:[%s298 + $0x74] sm:$0xf] %v1015
        %1080 = vst [vmem:[%s298 + $0x78] sm:$0xf] %v1016
        %1081 = vst [vmem:[%s298 + $0x7c] sm:$0xf] %v1017
      $region44: #{matmul_affine.1} parent=35 // pred_fallthru
        _
      %s1082 = smul.u32 32, %s20
      %p1083 = scmp.lt.s32.totalorder %s1082, 255
      %s1084 = scalar_select %p1083, %s1082, 255
      %p1085 = scmp.lt.s32.totalorder %s21, 0
      %s1086 = scalar_select %p1085, %s21, 0
      %s1087 = sadd.s32 %s1086, %s1084
      %s1088 = smul.addr %s1087, 4
      %s1089 = scalar_lea.vmem %s4, %s1088
      // Predicated region
      $region45: #{matmul_affine.1} parent=35 // pred_check
        %p1090 = pneg %p162
      $region46: #{matmul_affine.1} parent=35 // pred_check_branch
        %1092 = sbr.rel (%p1090) target = $region48
      $region47: #{matmul_affine.1} parent=35 // pred_region
        %s1093 = smul.u32 32, %s20
      $region48: #{matmul_affine.1} parent=35 // pred_fallthru
        _
    $region36: #{matmul_affine.1} parent=5 // pred_fallthru
      _
    %p1094 = scmp.le.s32.totalorder 2, %s10
    // Predicated region
    $region49: #{matmul_affine.1} parent=5 // pred_check
      %p1095 = pneg %p1094
    $region50: #{matmul_affine.1} parent=5 // pred_check_branch
      %1097 = sbr.rel (%p1095) target = $region52
    $region51: #{matmul_affine.1} parent=5 // pred_region
      %s1098 = ssub.s32 %s10, 2
      // Predicated region
      $region53: #{matmul_affine.1} parent=51 // pred_check
        %p1099 = pneg %p168
      $region54: #{matmul_affine.1} parent=51 // pred_check_branch
        %1101 = sbr.rel (%p1099) target = $region56
      $region55: #{matmul_affine.1} parent=51 // pred_region
        %s1102 = smul.u32 32, %s23
        %p1103 = scmp.lt.s32.totalorder %s1102, 255
        %s1104 = scalar_select %p1103, %s1102, 255
        %p1105 = scmp.lt.s32.totalorder %s24, 0
        %s1106 = scalar_select %p1105, %s24, 0
        %s1107 = sadd.s32 %s1106, %s1104
        %s1108 = smul.addr %s1107, 4
        %s1109 = scalar_lea.vmem %s4, %s1108
      $region56: #{matmul_affine.1} parent=51 // pred_fallthru
        _
    $region52: #{matmul_affine.1} parent=5 // pred_fallthru
      _
  $region6: #{matmul_affine.1} parent=0 // loop_footer
    %s14 = sadd.s32 1, %s10
  $region7: #{matmul_affine.1} parent=0 // loop_footer_branch
    %9 = sbr.rel target = $region3
  $region8: #{matmul_affine.1} parent=0 // loop_exit
    _

</llo_original>
